<compile_context>
chip_gen: v5e
topology: v5e:2x2
jax: 0.10.0
libtpu: 0.0.40
codegen_flags: <defaults>
</compile_context>

<pallas_src>
import functools

import jax
import jax.numpy as jnp
from jax.experimental import pallas as pl
from jax.experimental.pallas import tpu as pltpu


def _elu(v):
    # F.elu with alpha=1.0
    return jnp.where(v > 0.0, v, jnp.exp(jnp.minimum(v, 0.0)) - 1.0)


# ------------------------------ host-side packing -----------------------------
def _align8(n):
    return -(-n // 8) * 8


def _pack_params(blocks):
    """Pack a list of (name, 2-D f32 array) row-wise into one VMEM-friendly buffer.

    Each block starts on an 8-aligned sublane offset; columns are zero-padded to
    a common lane width (rounded up to a multiple of 128).  Returns
    (packed_buffer, layout) with layout[name] = (row_offset, n_rows, n_cols)
    as static Python ints for free static ref slicing inside the kernel.
    """
    width = max(int(a.shape[1]) for _, a in blocks)
    width = -(-width // 128) * 128
    layout = {}
    chunks = []
    row = 0
    for name, a in blocks:
        a = jnp.asarray(a, jnp.float32)
        nr, nc = int(a.shape[0]), int(a.shape[1])
        layout[name] = (row, nr, nc)
        chunks.append(jnp.pad(a, ((0, 0), (0, width - nc))))
        row += nr
        aligned = _align8(row)
        if aligned != row:
            chunks.append(jnp.zeros((aligned - row, width), jnp.float32))
            row = aligned
    return jnp.concatenate(chunks, axis=0), layout


# ---------------------------------- kernel ------------------------------------
def qmix_kernel(agent_obs_ref, gs_ref, w_ref, out_ref,
                gi_scr, h_scr, w1_scr,
                *, layout, num_agents, hidden, mixing_hidden):
    NA, H, M = num_agents, hidden, mixing_hidden

    def blk(name):
        r0, nr, nc = layout[name]           # static Python ints -> free static slice
        return w_ref[r0:r0 + nr, 0:nc]

    # ---- fused (agent_ff_in o GRU-input-gates), hoisted out of the recurrence --
    gi_scr[...] = (jnp.dot(agent_obs_ref[...], blk("w_comb"),
                           preferred_element_type=jnp.float32) + blk("b_comb"))

    w_hh = blk("w_hh")                       # (H, 3H) -- loaded once, reused
    b_hh = blk("b_hh")                       # (1, 3H)

    # ---- GRU over the num_agents "sequence": fully unrolled serial hot loop ----
    # (NA is a small static constant; unrolling with literal indices gives the
    #  scheduler full visibility -- equivalent to fori_loop(..., unroll=True).)
    h = jnp.zeros((1, H), jnp.float32)
    for t in range(NA):
        gi = gi_scr[t:t + 1, :]                                              # (1, 3H)
        gh = jnp.dot(h, w_hh, preferred_element_type=jnp.float32) + b_hh     # (1, 3H)
        r = jax.nn.sigmoid(gi[:, 0:H] + gh[:, 0:H])
        z = jax.nn.sigmoid(gi[:, H:2 * H] + gh[:, H:2 * H])
        n = jnp.tanh(gi[:, 2 * H:3 * H] + r * gh[:, 2 * H:3 * H])
        h = (1.0 - z) * n + z * h
        h_scr[t:t + 1, :] = h

    # ---- agent_ff_out + max over actions -> per-agent Q  (NA, 1) ---------------
    logits = (jnp.dot(h_scr[...], blk("w_out"),
                      preferred_element_type=jnp.float32) + blk("b_out"))    # (NA, A)
    q_col = jnp.max(logits, axis=1, keepdims=True)                           # (NA, 1)

    gs = gs_ref[...]                                                         # (1, S)

    # ---- hyper-net 1: one matmul, tiny scratch relayout (1, NA*M) -> (NA, M) ---
    w1_flat = jnp.abs(jnp.dot(gs, blk("w_h1"),
                              preferred_element_type=jnp.float32) + blk("b_h1"))
    for a in range(NA):                      # NA independent single-row stores
        w1_scr[a:a + 1, :] = w1_flat[:, a * M:(a + 1) * M]

    # ---- monotonic mixing layer 1: broadcast-mul + sublane reduce --------------
    mix1 = _elu(jnp.sum(q_col * w1_scr[...], axis=0, keepdims=True))         # (1, M)

    # ---- hyper-net 2 + mixing layer 2 ------------------------------------------
    w2_row = jnp.abs(jnp.dot(gs, blk("w_h2"),
                             preferred_element_type=jnp.float32) + blk("b_h2"))   # (1, M)
    out_ref[...] = _elu(jnp.sum(mix1 * w2_row, axis=1, keepdims=True))       # (1, 1)


# --------------------------------- wrapper ------------------------------------
def qmix_forward(params, global_state, agent_obs):
    (w_in, b_in, w_ih, b_ih, w_hh, b_hh,
     w_out, b_out, w_h1_flat, b_h1_flat, w_h2, b_h2) = params
    NA, _ = agent_obs.shape
    H = w_hh.shape[0]
    M = w_h2.shape[1]

    # Fold agent_ff_in into the GRU input transform (exact: no nonlinearity between).
    w_comb = w_in @ w_ih                    # (AS, 3H)
    b_comb = b_in @ w_ih + b_ih             # (1, 3H)

    packed, layout = _pack_params([
        ("w_comb", w_comb), ("b_comb", b_comb),
        ("w_hh", w_hh), ("b_hh", b_hh),
        ("w_out", w_out), ("b_out", b_out),
        ("w_h1", w_h1_flat), ("b_h1", b_h1_flat),
        ("w_h2", w_h2), ("b_h2", b_h2),
    ])

    kernel = functools.partial(qmix_kernel, layout=layout,
                               num_agents=NA, hidden=H, mixing_hidden=M)
    vmem = lambda: pl.BlockSpec(memory_space=pltpu.MemorySpace.VMEM)

    return pl.pallas_call(
        kernel,
        out_shape=jax.ShapeDtypeStruct((1, 1), jnp.float32),
        in_specs=[vmem(), vmem(), vmem()],
        out_specs=vmem(),
        scratch_shapes=[
            pltpu.VMEM((NA, 3 * H), jnp.float32),   # hoisted GRU input gates
            pltpu.VMEM((NA, H), jnp.float32),       # GRU hidden sequence
            pltpu.VMEM((NA, M), jnp.float32),       # hyper-net1 weight matrix
        ],
    )(agent_obs, global_state, packed)


# ---------------------------- reference (pure JAX) ----------------------------
def qmix_reference(flat_params, global_state, agent_obs, NA, H, M):
    (w_in, b_in, w_ih, b_ih, w_hh, b_hh,
     w_out, b_out, w_h1_flat, b_h1_flat, w_h2, b_h2) = flat_params
    x = agent_obs @ w_in + b_in
    h = jnp.zeros((1, H), jnp.float32)
    hs = []
    for t in range(NA):
        x_t = x[t:t + 1]
        gi = x_t @ w_ih + b_ih
        gh = h @ w_hh + b_hh
        r = jax.nn.sigmoid(gi[:, 0:H] + gh[:, 0:H])
        z = jax.nn.sigmoid(gi[:, H:2 * H] + gh[:, H:2 * H])
        n = jnp.tanh(gi[:, 2 * H:3 * H] + r * gh[:, 2 * H:3 * H])
        h = (1.0 - z) * n + z * h
        hs.append(h)
    hs = jnp.concatenate(hs, axis=0)
    q_row = jnp.max(hs @ w_out + b_out, axis=1)[None, :]                     # (1, NA)
    w1 = jnp.abs(global_state @ w_h1_flat + b_h1_flat).reshape(NA, M)
    w2 = jnp.abs(global_state @ w_h2 + b_h2).reshape(M, 1)
    q_tot = _elu(q_row @ w1)
    q_tot = _elu(q_tot @ w2)
    return q_tot


# ----------------------------------- main --------------------------------------
if __name__ == "__main__":
    NUM_AGENTS = 8
    ACTION_SPACE = 8
    STATE_SHAPE = 32
    AGENT_SHAPE = 16
    AGENT_HIDDEN = 32
    MIX_HIDDEN = 32

    key = jax.random.PRNGKey(0)
    kobs, kgs, *kp = jax.random.split(key, 10)

    def lin(k, fan_in, fan_out):
        kw, kb = jax.random.split(k)
        bound = 1.0 / jnp.sqrt(jnp.float32(fan_in))
        w = jax.random.uniform(kw, (fan_in, fan_out), jnp.float32, -bound, bound)
        b = jax.random.uniform(kb, (1, fan_out), jnp.float32, -bound, bound)
        return w, b

    w_in, b_in = lin(kp[0], AGENT_SHAPE, AGENT_SHAPE)
    w_ih, b_ih = lin(kp[1], AGENT_SHAPE, 3 * AGENT_HIDDEN)     # gates [r|z|n]
    w_hh, b_hh = lin(kp[2], AGENT_HIDDEN, 3 * AGENT_HIDDEN)
    w_out, b_out = lin(kp[3], AGENT_HIDDEN, ACTION_SPACE)
    w_h1_flat, b_h1_flat = lin(kp[4], STATE_SHAPE, NUM_AGENTS * MIX_HIDDEN)
    w_h2, b_h2 = lin(kp[5], STATE_SHAPE, MIX_HIDDEN)

    flat_params = (w_in, b_in, w_ih, b_ih, w_hh, b_hh,
                   w_out, b_out, w_h1_flat, b_h1_flat, w_h2, b_h2)

    global_state = jax.random.normal(kgs, (1, STATE_SHAPE), jnp.float32)
    agent_obs = jax.random.normal(kobs, (NUM_AGENTS, AGENT_SHAPE), jnp.float32)

    q_tot = qmix_forward(flat_params, global_state, agent_obs)
    q_tot = jax.block_until_ready(q_tot)

    q_ref = qmix_reference(flat_params, global_state, agent_obs,
                           NUM_AGENTS, AGENT_HIDDEN, MIX_HIDDEN)
    assert q_tot.shape == (1, 1)
    assert jnp.allclose(q_tot, q_ref, rtol=2e-2, atol=2e-2), (q_tot, q_ref)

    print("KERNEL_OK")
</pallas_src>

<mosaic_0001>
module attributes {stable_mosaic.version = 11 : i64} {
  func.func @qmix_kernel(%arg0: memref<8x16xf32, #tpu.memory_space<vmem>>, %arg1: memref<1x32xf32, #tpu.memory_space<vmem>>, %arg2: memref<184x256xf32, #tpu.memory_space<vmem>>, %arg3: memref<1x1xf32, #tpu.memory_space<vmem>>, %arg4: memref<8x96xf32, #tpu.memory_space<vmem>>, %arg5: memref<8x32xf32, #tpu.memory_space<vmem>>, %arg6: memref<8x32xf32, #tpu.memory_space<vmem>>) attributes {dimension_semantics = [], scalar_prefetch = 0 : i64, scratch_operands = 3 : i64, tpu.core_type = #tpu.core_type<tc>} {
    %c0 = arith.constant 0 : index
    %c0_0 = arith.constant 0 : index
    %0 = vector.load %arg0[%c0, %c0_0] : memref<8x16xf32, #tpu.memory_space<vmem>>, vector<8x16xf32>
    %c0_1 = arith.constant 0 : index
    %c0_2 = arith.constant 0 : index
    %1 = vector.load %arg2[%c0_1, %c0_2] : memref<184x256xf32, #tpu.memory_space<vmem>>, vector<16x96xf32>
    %cst = arith.constant dense<0.000000e+00> : vector<8x96xf32>
    %2 = tpu.matmul %0, %1, %cst {dimension_numbers = #tpu.dot_dimension_numbers<[1], [0], [0], [1], [0, 0, 1, 1], [], []>} : vector<8x16xf32>, vector<16x96xf32>, vector<8x96xf32> -> vector<8x96xf32>
    %c16 = arith.constant 16 : index
    %c0_3 = arith.constant 0 : index
    %3 = vector.load %arg2[%c16, %c0_3] : memref<184x256xf32, #tpu.memory_space<vmem>>, vector<1x96xf32>
    %4 = vector.broadcast %3 : vector<1x96xf32> to vector<8x96xf32>
    %5 = arith.addf %2, %4 : vector<8x96xf32>
    %c0_4 = arith.constant 0 : index
    %c0_5 = arith.constant 0 : index
    %6 = vector.load %arg4[%c0_4, %c0_5] : memref<8x96xf32, #tpu.memory_space<vmem>>, vector<8x96xf32>
    tpu.vector_store %arg4[%c0_4, %c0_5], %5 {strides = array<i32>} : memref<8x96xf32, #tpu.memory_space<vmem>>, vector<8x96xf32>,
    %c24 = arith.constant 24 : index
    %c0_6 = arith.constant 0 : index
    %7 = vector.load %arg2[%c24, %c0_6] : memref<184x256xf32, #tpu.memory_space<vmem>>, vector<32x96xf32>
    %c56 = arith.constant 56 : index
    %c0_7 = arith.constant 0 : index
    %8 = vector.load %arg2[%c56, %c0_7] : memref<184x256xf32, #tpu.memory_space<vmem>>, vector<1x96xf32>
    %cst_8 = arith.constant 0.000000e+00 : f32
    %9 = vector.broadcast %cst_8 : f32 to vector<1x32xf32>
    %c0_9 = arith.constant 0 : index
    %c0_10 = arith.constant 0 : index
    %10 = vector.load %arg4[%c0_9, %c0_10] : memref<8x96xf32, #tpu.memory_space<vmem>>, vector<1x96xf32>
    %cst_11 = arith.constant dense<0.000000e+00> : vector<1x96xf32>
    %11 = tpu.matmul %9, %7, %cst_11 {dimension_numbers = #tpu.dot_dimension_numbers<[1], [0], [0], [1], [0, 0, 1, 1], [], []>} : vector<1x32xf32>, vector<32x96xf32>, vector<1x96xf32> -> vector<1x96xf32>
    %12 = arith.addf %11, %8 : vector<1x96xf32>
    %13 = vector.extract_strided_slice %10 {offsets = [0, 0], sizes = [1, 32], strides = [1, 1]} : vector<1x96xf32> to vector<1x32xf32>
    %14 = vector.extract_strided_slice %12 {offsets = [0, 0], sizes = [1, 32], strides = [1, 1]} : vector<1x96xf32> to vector<1x32xf32>
    %15 = arith.addf %13, %14 : vector<1x32xf32>
    %16 = arith.negf %15 : vector<1x32xf32>
    %17 = math.exp %16 : vector<1x32xf32>
    %cst_12 = arith.constant 1.000000e+00 : f32
    %18 = vector.broadcast %cst_12 : f32 to vector<1x32xf32>
    %19 = arith.addf %18, %17 : vector<1x32xf32>
    %20 = arith.divf %18, %19 : vector<1x32xf32>
    %21 = vector.extract_strided_slice %10 {offsets = [0, 32], sizes = [1, 32], strides = [1, 1]} : vector<1x96xf32> to vector<1x32xf32>
    %22 = vector.extract_strided_slice %12 {offsets = [0, 32], sizes = [1, 32], strides = [1, 1]} : vector<1x96xf32> to vector<1x32xf32>
    %23 = arith.addf %21, %22 : vector<1x32xf32>
    %24 = arith.negf %23 : vector<1x32xf32>
    %25 = math.exp %24 : vector<1x32xf32>
    %cst_13 = arith.constant 1.000000e+00 : f32
    %26 = vector.broadcast %cst_13 : f32 to vector<1x32xf32>
    %27 = arith.addf %26, %25 : vector<1x32xf32>
    %28 = arith.divf %26, %27 : vector<1x32xf32>
    %29 = vector.extract_strided_slice %10 {offsets = [0, 64], sizes = [1, 32], strides = [1, 1]} : vector<1x96xf32> to vector<1x32xf32>
    %30 = vector.extract_strided_slice %12 {offsets = [0, 64], sizes = [1, 32], strides = [1, 1]} : vector<1x96xf32> to vector<1x32xf32>
    %31 = arith.mulf %20, %30 : vector<1x32xf32>
    %32 = arith.addf %29, %31 : vector<1x32xf32>
    %33 = math.tanh %32 : vector<1x32xf32>
    %cst_14 = arith.constant 1.000000e+00 : f32
    %34 = vector.broadcast %cst_14 : f32 to vector<1x32xf32>
    %35 = arith.subf %34, %28 : vector<1x32xf32>
    %36 = arith.mulf %35, %33 : vector<1x32xf32>
    %37 = arith.mulf %28, %9 : vector<1x32xf32>
    %38 = arith.addf %36, %37 : vector<1x32xf32>
    %c0_15 = arith.constant 0 : index
    %c0_16 = arith.constant 0 : index
    %39 = vector.load %arg5[%c0_15, %c0_16] : memref<8x32xf32, #tpu.memory_space<vmem>>, vector<1x32xf32>
    tpu.vector_store %arg5[%c0_15, %c0_16], %38 {strides = array<i32>} : memref<8x32xf32, #tpu.memory_space<vmem>>, vector<1x32xf32>,
    %c1 = arith.constant 1 : index
    %c0_17 = arith.constant 0 : index
    %40 = vector.load %arg4[%c1, %c0_17] : memref<8x96xf32, #tpu.memory_space<vmem>>, vector<1x96xf32>
    %cst_18 = arith.constant dense<0.000000e+00> : vector<1x96xf32>
    %41 = tpu.matmul %38, %7, %cst_18 {dimension_numbers = #tpu.dot_dimension_numbers<[1], [0], [0], [1], [0, 0, 1, 1], [], []>} : vector<1x32xf32>, vector<32x96xf32>, vector<1x96xf32> -> vector<1x96xf32>
    %42 = arith.addf %41, %8 : vector<1x96xf32>
    %43 = vector.extract_strided_slice %40 {offsets = [0, 0], sizes = [1, 32], strides = [1, 1]} : vector<1x96xf32> to vector<1x32xf32>
    %44 = vector.extract_strided_slice %42 {offsets = [0, 0], sizes = [1, 32], strides = [1, 1]} : vector<1x96xf32> to vector<1x32xf32>
    %45 = arith.addf %43, %44 : vector<1x32xf32>
    %46 = arith.negf %45 : vector<1x32xf32>
    %47 = math.exp %46 : vector<1x32xf32>
    %cst_19 = arith.constant 1.000000e+00 : f32
    %48 = vector.broadcast %cst_19 : f32 to vector<1x32xf32>
    %49 = arith.addf %48, %47 : vector<1x32xf32>
    %50 = arith.divf %48, %49 : vector<1x32xf32>
    %51 = vector.extract_strided_slice %40 {offsets = [0, 32], sizes = [1, 32], strides = [1, 1]} : vector<1x96xf32> to vector<1x32xf32>
    %52 = vector.extract_strided_slice %42 {offsets = [0, 32], sizes = [1, 32], strides = [1, 1]} : vector<1x96xf32> to vector<1x32xf32>
    %53 = arith.addf %51, %52 : vector<1x32xf32>
    %54 = arith.negf %53 : vector<1x32xf32>
    %55 = math.exp %54 : vector<1x32xf32>
    %cst_20 = arith.constant 1.000000e+00 : f32
    %56 = vector.broadcast %cst_20 : f32 to vector<1x32xf32>
    %57 = arith.addf %56, %55 : vector<1x32xf32>
    %58 = arith.divf %56, %57 : vector<1x32xf32>
    %59 = vector.extract_strided_slice %40 {offsets = [0, 64], sizes = [1, 32], strides = [1, 1]} : vector<1x96xf32> to vector<1x32xf32>
    %60 = vector.extract_strided_slice %42 {offsets = [0, 64], sizes = [1, 32], strides = [1, 1]} : vector<1x96xf32> to vector<1x32xf32>
    %61 = arith.mulf %50, %60 : vector<1x32xf32>
    %62 = arith.addf %59, %61 : vector<1x32xf32>
    %63 = math.tanh %62 : vector<1x32xf32>
    %cst_21 = arith.constant 1.000000e+00 : f32
    %64 = vector.broadcast %cst_21 : f32 to vector<1x32xf32>
    %65 = arith.subf %64, %58 : vector<1x32xf32>
    %66 = arith.mulf %65, %63 : vector<1x32xf32>
    %67 = arith.mulf %58, %38 : vector<1x32xf32>
    %68 = arith.addf %66, %67 : vector<1x32xf32>
    %c1_22 = arith.constant 1 : index
    %c0_23 = arith.constant 0 : index
    %69 = vector.load %arg5[%c1_22, %c0_23] : memref<8x32xf32, #tpu.memory_space<vmem>>, vector<1x32xf32>
    tpu.vector_store %arg5[%c1_22, %c0_23], %68 {strides = array<i32>} : memref<8x32xf32, #tpu.memory_space<vmem>>, vector<1x32xf32>,
    %c2 = arith.constant 2 : index
    %c0_24 = arith.constant 0 : index
    %70 = vector.load %arg4[%c2, %c0_24] : memref<8x96xf32, #tpu.memory_space<vmem>>, vector<1x96xf32>
    %cst_25 = arith.constant dense<0.000000e+00> : vector<1x96xf32>
    %71 = tpu.matmul %68, %7, %cst_25 {dimension_numbers = #tpu.dot_dimension_numbers<[1], [0], [0], [1], [0, 0, 1, 1], [], []>} : vector<1x32xf32>, vector<32x96xf32>, vector<1x96xf32> -> vector<1x96xf32>
    %72 = arith.addf %71, %8 : vector<1x96xf32>
    %73 = vector.extract_strided_slice %70 {offsets = [0, 0], sizes = [1, 32], strides = [1, 1]} : vector<1x96xf32> to vector<1x32xf32>
    %74 = vector.extract_strided_slice %72 {offsets = [0, 0], sizes = [1, 32], strides = [1, 1]} : vector<1x96xf32> to vector<1x32xf32>
    %75 = arith.addf %73, %74 : vector<1x32xf32>
    %76 = arith.negf %75 : vector<1x32xf32>
    %77 = math.exp %76 : vector<1x32xf32>
    %cst_26 = arith.constant 1.000000e+00 : f32
    %78 = vector.broadcast %cst_26 : f32 to vector<1x32xf32>
    %79 = arith.addf %78, %77 : vector<1x32xf32>
    %80 = arith.divf %78, %79 : vector<1x32xf32>
    %81 = vector.extract_strided_slice %70 {offsets = [0, 32], sizes = [1, 32], strides = [1, 1]} : vector<1x96xf32> to vector<1x32xf32>
    %82 = vector.extract_strided_slice %72 {offsets = [0, 32], sizes = [1, 32], strides = [1, 1]} : vector<1x96xf32> to vector<1x32xf32>
    %83 = arith.addf %81, %82 : vector<1x32xf32>
    %84 = arith.negf %83 : vector<1x32xf32>
    %85 = math.exp %84 : vector<1x32xf32>
    %cst_27 = arith.constant 1.000000e+00 : f32
    %86 = vector.broadcast %cst_27 : f32 to vector<1x32xf32>
    %87 = arith.addf %86, %85 : vector<1x32xf32>
    %88 = arith.divf %86, %87 : vector<1x32xf32>
    %89 = vector.extract_strided_slice %70 {offsets = [0, 64], sizes = [1, 32], strides = [1, 1]} : vector<1x96xf32> to vector<1x32xf32>
    %90 = vector.extract_strided_slice %72 {offsets = [0, 64], sizes = [1, 32], strides = [1, 1]} : vector<1x96xf32> to vector<1x32xf32>
    %91 = arith.mulf %80, %90 : vector<1x32xf32>
    %92 = arith.addf %89, %91 : vector<1x32xf32>
    %93 = math.tanh %92 : vector<1x32xf32>
    %cst_28 = arith.constant 1.000000e+00 : f32
    %94 = vector.broadcast %cst_28 : f32 to vector<1x32xf32>
    %95 = arith.subf %94, %88 : vector<1x32xf32>
    %96 = arith.mulf %95, %93 : vector<1x32xf32>
    %97 = arith.mulf %88, %68 : vector<1x32xf32>
    %98 = arith.addf %96, %97 : vector<1x32xf32>
    %c2_29 = arith.constant 2 : index
    %c0_30 = arith.constant 0 : index
    %99 = vector.load %arg5[%c2_29, %c0_30] : memref<8x32xf32, #tpu.memory_space<vmem>>, vector<1x32xf32>
    tpu.vector_store %arg5[%c2_29, %c0_30], %98 {strides = array<i32>} : memref<8x32xf32, #tpu.memory_space<vmem>>, vector<1x32xf32>,
    %c3 = arith.constant 3 : index
    %c0_31 = arith.constant 0 : index
    %100 = vector.load %arg4[%c3, %c0_31] : memref<8x96xf32, #tpu.memory_space<vmem>>, vector<1x96xf32>
    %cst_32 = arith.constant dense<0.000000e+00> : vector<1x96xf32>
    %101 = tpu.matmul %98, %7, %cst_32 {dimension_numbers = #tpu.dot_dimension_numbers<[1], [0], [0], [1], [0, 0, 1, 1], [], []>} : vector<1x32xf32>, vector<32x96xf32>, vector<1x96xf32> -> vector<1x96xf32>
    %102 = arith.addf %101, %8 : vector<1x96xf32>
    %103 = vector.extract_strided_slice %100 {offsets = [0, 0], sizes = [1, 32], strides = [1, 1]} : vector<1x96xf32> to vector<1x32xf32>
    %104 = vector.extract_strided_slice %102 {offsets = [0, 0], sizes = [1, 32], strides = [1, 1]} : vector<1x96xf32> to vector<1x32xf32>
    %105 = arith.addf %103, %104 : vector<1x32xf32>
    %106 = arith.negf %105 : vector<1x32xf32>
    %107 = math.exp %106 : vector<1x32xf32>
    %cst_33 = arith.constant 1.000000e+00 : f32
    %108 = vector.broadcast %cst_33 : f32 to vector<1x32xf32>
    %109 = arith.addf %108, %107 : vector<1x32xf32>
    %110 = arith.divf %108, %109 : vector<1x32xf32>
    %111 = vector.extract_strided_slice %100 {offsets = [0, 32], sizes = [1, 32], strides = [1, 1]} : vector<1x96xf32> to vector<1x32xf32>
    %112 = vector.extract_strided_slice %102 {offsets = [0, 32], sizes = [1, 32], strides = [1, 1]} : vector<1x96xf32> to vector<1x32xf32>
    %113 = arith.addf %111, %112 : vector<1x32xf32>
    %114 = arith.negf %113 : vector<1x32xf32>
    %115 = math.exp %114 : vector<1x32xf32>
    %cst_34 = arith.constant 1.000000e+00 : f32
    %116 = vector.broadcast %cst_34 : f32 to vector<1x32xf32>
    %117 = arith.addf %116, %115 : vector<1x32xf32>
    %118 = arith.divf %116, %117 : vector<1x32xf32>
    %119 = vector.extract_strided_slice %100 {offsets = [0, 64], sizes = [1, 32], strides = [1, 1]} : vector<1x96xf32> to vector<1x32xf32>
    %120 = vector.extract_strided_slice %102 {offsets = [0, 64], sizes = [1, 32], strides = [1, 1]} : vector<1x96xf32> to vector<1x32xf32>
    %121 = arith.mulf %110, %120 : vector<1x32xf32>
    %122 = arith.addf %119, %121 : vector<1x32xf32>
    %123 = math.tanh %122 : vector<1x32xf32>
    %cst_35 = arith.constant 1.000000e+00 : f32
    %124 = vector.broadcast %cst_35 : f32 to vector<1x32xf32>
    %125 = arith.subf %124, %118 : vector<1x32xf32>
    %126 = arith.mulf %125, %123 : vector<1x32xf32>
    %127 = arith.mulf %118, %98 : vector<1x32xf32>
    %128 = arith.addf %126, %127 : vector<1x32xf32>
    %c3_36 = arith.constant 3 : index
    %c0_37 = arith.constant 0 : index
    %129 = vector.load %arg5[%c3_36, %c0_37] : memref<8x32xf32, #tpu.memory_space<vmem>>, vector<1x32xf32>
    tpu.vector_store %arg5[%c3_36, %c0_37], %128 {strides = array<i32>} : memref<8x32xf32, #tpu.memory_space<vmem>>, vector<1x32xf32>,
    %c4 = arith.constant 4 : index
    %c0_38 = arith.constant 0 : index
    %130 = vector.load %arg4[%c4, %c0_38] : memref<8x96xf32, #tpu.memory_space<vmem>>, vector<1x96xf32>
    %cst_39 = arith.constant dense<0.000000e+00> : vector<1x96xf32>
    %131 = tpu.matmul %128, %7, %cst_39 {dimension_numbers = #tpu.dot_dimension_numbers<[1], [0], [0], [1], [0, 0, 1, 1], [], []>} : vector<1x32xf32>, vector<32x96xf32>, vector<1x96xf32> -> vector<1x96xf32>
    %132 = arith.addf %131, %8 : vector<1x96xf32>
    %133 = vector.extract_strided_slice %130 {offsets = [0, 0], sizes = [1, 32], strides = [1, 1]} : vector<1x96xf32> to vector<1x32xf32>
    %134 = vector.extract_strided_slice %132 {offsets = [0, 0], sizes = [1, 32], strides = [1, 1]} : vector<1x96xf32> to vector<1x32xf32>
    %135 = arith.addf %133, %134 : vector<1x32xf32>
    %136 = arith.negf %135 : vector<1x32xf32>
    %137 = math.exp %136 : vector<1x32xf32>
    %cst_40 = arith.constant 1.000000e+00 : f32
    %138 = vector.broadcast %cst_40 : f32 to vector<1x32xf32>
    %139 = arith.addf %138, %137 : vector<1x32xf32>
    %140 = arith.divf %138, %139 : vector<1x32xf32>
    %141 = vector.extract_strided_slice %130 {offsets = [0, 32], sizes = [1, 32], strides = [1, 1]} : vector<1x96xf32> to vector<1x32xf32>
    %142 = vector.extract_strided_slice %132 {offsets = [0, 32], sizes = [1, 32], strides = [1, 1]} : vector<1x96xf32> to vector<1x32xf32>
    %143 = arith.addf %141, %142 : vector<1x32xf32>
    %144 = arith.negf %143 : vector<1x32xf32>
    %145 = math.exp %144 : vector<1x32xf32>
    %cst_41 = arith.constant 1.000000e+00 : f32
    %146 = vector.broadcast %cst_41 : f32 to vector<1x32xf32>
    %147 = arith.addf %146, %145 : vector<1x32xf32>
    %148 = arith.divf %146, %147 : vector<1x32xf32>
    %149 = vector.extract_strided_slice %130 {offsets = [0, 64], sizes = [1, 32], strides = [1, 1]} : vector<1x96xf32> to vector<1x32xf32>
    %150 = vector.extract_strided_slice %132 {offsets = [0, 64], sizes = [1, 32], strides = [1, 1]} : vector<1x96xf32> to vector<1x32xf32>
    %151 = arith.mulf %140, %150 : vector<1x32xf32>
    %152 = arith.addf %149, %151 : vector<1x32xf32>
    %153 = math.tanh %152 : vector<1x32xf32>
    %cst_42 = arith.constant 1.000000e+00 : f32
    %154 = vector.broadcast %cst_42 : f32 to vector<1x32xf32>
    %155 = arith.subf %154, %148 : vector<1x32xf32>
    %156 = arith.mulf %155, %153 : vector<1x32xf32>
    %157 = arith.mulf %148, %128 : vector<1x32xf32>
    %158 = arith.addf %156, %157 : vector<1x32xf32>
    %c4_43 = arith.constant 4 : index
    %c0_44 = arith.constant 0 : index
    %159 = vector.load %arg5[%c4_43, %c0_44] : memref<8x32xf32, #tpu.memory_space<vmem>>, vector<1x32xf32>
    tpu.vector_store %arg5[%c4_43, %c0_44], %158 {strides = array<i32>} : memref<8x32xf32, #tpu.memory_space<vmem>>, vector<1x32xf32>,
    %c5 = arith.constant 5 : index
    %c0_45 = arith.constant 0 : index
    %160 = vector.load %arg4[%c5, %c0_45] : memref<8x96xf32, #tpu.memory_space<vmem>>, vector<1x96xf32>
    %cst_46 = arith.constant dense<0.000000e+00> : vector<1x96xf32>
    %161 = tpu.matmul %158, %7, %cst_46 {dimension_numbers = #tpu.dot_dimension_numbers<[1], [0], [0], [1], [0, 0, 1, 1], [], []>} : vector<1x32xf32>, vector<32x96xf32>, vector<1x96xf32> -> vector<1x96xf32>
    %162 = arith.addf %161, %8 : vector<1x96xf32>
    %163 = vector.extract_strided_slice %160 {offsets = [0, 0], sizes = [1, 32], strides = [1, 1]} : vector<1x96xf32> to vector<1x32xf32>
    %164 = vector.extract_strided_slice %162 {offsets = [0, 0], sizes = [1, 32], strides = [1, 1]} : vector<1x96xf32> to vector<1x32xf32>
    %165 = arith.addf %163, %164 : vector<1x32xf32>
    %166 = arith.negf %165 : vector<1x32xf32>
    %167 = math.exp %166 : vector<1x32xf32>
    %cst_47 = arith.constant 1.000000e+00 : f32
    %168 = vector.broadcast %cst_47 : f32 to vector<1x32xf32>
    %169 = arith.addf %168, %167 : vector<1x32xf32>
    %170 = arith.divf %168, %169 : vector<1x32xf32>
    %171 = vector.extract_strided_slice %160 {offsets = [0, 32], sizes = [1, 32], strides = [1, 1]} : vector<1x96xf32> to vector<1x32xf32>
    %172 = vector.extract_strided_slice %162 {offsets = [0, 32], sizes = [1, 32], strides = [1, 1]} : vector<1x96xf32> to vector<1x32xf32>
    %173 = arith.addf %171, %172 : vector<1x32xf32>
    %174 = arith.negf %173 : vector<1x32xf32>
    %175 = math.exp %174 : vector<1x32xf32>
    %cst_48 = arith.constant 1.000000e+00 : f32
    %176 = vector.broadcast %cst_48 : f32 to vector<1x32xf32>
    %177 = arith.addf %176, %175 : vector<1x32xf32>
    %178 = arith.divf %176, %177 : vector<1x32xf32>
    %179 = vector.extract_strided_slice %160 {offsets = [0, 64], sizes = [1, 32], strides = [1, 1]} : vector<1x96xf32> to vector<1x32xf32>
    %180 = vector.extract_strided_slice %162 {offsets = [0, 64], sizes = [1, 32], strides = [1, 1]} : vector<1x96xf32> to vector<1x32xf32>
    %181 = arith.mulf %170, %180 : vector<1x32xf32>
    %182 = arith.addf %179, %181 : vector<1x32xf32>
    %183 = math.tanh %182 : vector<1x32xf32>
    %cst_49 = arith.constant 1.000000e+00 : f32
    %184 = vector.broadcast %cst_49 : f32 to vector<1x32xf32>
    %185 = arith.subf %184, %178 : vector<1x32xf32>
    %186 = arith.mulf %185, %183 : vector<1x32xf32>
    %187 = arith.mulf %178, %158 : vector<1x32xf32>
    %188 = arith.addf %186, %187 : vector<1x32xf32>
    %c5_50 = arith.constant 5 : index
    %c0_51 = arith.constant 0 : index
    %189 = vector.load %arg5[%c5_50, %c0_51] : memref<8x32xf32, #tpu.memory_space<vmem>>, vector<1x32xf32>
    tpu.vector_store %arg5[%c5_50, %c0_51], %188 {strides = array<i32>} : memref<8x32xf32, #tpu.memory_space<vmem>>, vector<1x32xf32>,
    %c6 = arith.constant 6 : index
    %c0_52 = arith.constant 0 : index
    %190 = vector.load %arg4[%c6, %c0_52] : memref<8x96xf32, #tpu.memory_space<vmem>>, vector<1x96xf32>
    %cst_53 = arith.constant dense<0.000000e+00> : vector<1x96xf32>
    %191 = tpu.matmul %188, %7, %cst_53 {dimension_numbers = #tpu.dot_dimension_numbers<[1], [0], [0], [1], [0, 0, 1, 1], [], []>} : vector<1x32xf32>, vector<32x96xf32>, vector<1x96xf32> -> vector<1x96xf32>
    %192 = arith.addf %191, %8 : vector<1x96xf32>
    %193 = vector.extract_strided_slice %190 {offsets = [0, 0], sizes = [1, 32], strides = [1, 1]} : vector<1x96xf32> to vector<1x32xf32>
    %194 = vector.extract_strided_slice %192 {offsets = [0, 0], sizes = [1, 32], strides = [1, 1]} : vector<1x96xf32> to vector<1x32xf32>
    %195 = arith.addf %193, %194 : vector<1x32xf32>
    %196 = arith.negf %195 : vector<1x32xf32>
    %197 = math.exp %196 : vector<1x32xf32>
    %cst_54 = arith.constant 1.000000e+00 : f32
    %198 = vector.broadcast %cst_54 : f32 to vector<1x32xf32>
    %199 = arith.addf %198, %197 : vector<1x32xf32>
    %200 = arith.divf %198, %199 : vector<1x32xf32>
    %201 = vector.extract_strided_slice %190 {offsets = [0, 32], sizes = [1, 32], strides = [1, 1]} : vector<1x96xf32> to vector<1x32xf32>
    %202 = vector.extract_strided_slice %192 {offsets = [0, 32], sizes = [1, 32], strides = [1, 1]} : vector<1x96xf32> to vector<1x32xf32>
    %203 = arith.addf %201, %202 : vector<1x32xf32>
    %204 = arith.negf %203 : vector<1x32xf32>
    %205 = math.exp %204 : vector<1x32xf32>
    %cst_55 = arith.constant 1.000000e+00 : f32
    %206 = vector.broadcast %cst_55 : f32 to vector<1x32xf32>
    %207 = arith.addf %206, %205 : vector<1x32xf32>
    %208 = arith.divf %206, %207 : vector<1x32xf32>
    %209 = vector.extract_strided_slice %190 {offsets = [0, 64], sizes = [1, 32], strides = [1, 1]} : vector<1x96xf32> to vector<1x32xf32>
    %210 = vector.extract_strided_slice %192 {offsets = [0, 64], sizes = [1, 32], strides = [1, 1]} : vector<1x96xf32> to vector<1x32xf32>
    %211 = arith.mulf %200, %210 : vector<1x32xf32>
    %212 = arith.addf %209, %211 : vector<1x32xf32>
    %213 = math.tanh %212 : vector<1x32xf32>
    %cst_56 = arith.constant 1.000000e+00 : f32
    %214 = vector.broadcast %cst_56 : f32 to vector<1x32xf32>
    %215 = arith.subf %214, %208 : vector<1x32xf32>
    %216 = arith.mulf %215, %213 : vector<1x32xf32>
    %217 = arith.mulf %208, %188 : vector<1x32xf32>
    %218 = arith.addf %216, %217 : vector<1x32xf32>
    %c6_57 = arith.constant 6 : index
    %c0_58 = arith.constant 0 : index
    %219 = vector.load %arg5[%c6_57, %c0_58] : memref<8x32xf32, #tpu.memory_space<vmem>>, vector<1x32xf32>
    tpu.vector_store %arg5[%c6_57, %c0_58], %218 {strides = array<i32>} : memref<8x32xf32, #tpu.memory_space<vmem>>, vector<1x32xf32>,
    %c7 = arith.constant 7 : index
    %c0_59 = arith.constant 0 : index
    %220 = vector.load %arg4[%c7, %c0_59] : memref<8x96xf32, #tpu.memory_space<vmem>>, vector<1x96xf32>
    %cst_60 = arith.constant dense<0.000000e+00> : vector<1x96xf32>
    %221 = tpu.matmul %218, %7, %cst_60 {dimension_numbers = #tpu.dot_dimension_numbers<[1], [0], [0], [1], [0, 0, 1, 1], [], []>} : vector<1x32xf32>, vector<32x96xf32>, vector<1x96xf32> -> vector<1x96xf32>
    %222 = arith.addf %221, %8 : vector<1x96xf32>
    %223 = vector.extract_strided_slice %220 {offsets = [0, 0], sizes = [1, 32], strides = [1, 1]} : vector<1x96xf32> to vector<1x32xf32>
    %224 = vector.extract_strided_slice %222 {offsets = [0, 0], sizes = [1, 32], strides = [1, 1]} : vector<1x96xf32> to vector<1x32xf32>
    %225 = arith.addf %223, %224 : vector<1x32xf32>
    %226 = arith.negf %225 : vector<1x32xf32>
    %227 = math.exp %226 : vector<1x32xf32>
    %cst_61 = arith.constant 1.000000e+00 : f32
    %228 = vector.broadcast %cst_61 : f32 to vector<1x32xf32>
    %229 = arith.addf %228, %227 : vector<1x32xf32>
    %230 = arith.divf %228, %229 : vector<1x32xf32>
    %231 = vector.extract_strided_slice %220 {offsets = [0, 32], sizes = [1, 32], strides = [1, 1]} : vector<1x96xf32> to vector<1x32xf32>
    %232 = vector.extract_strided_slice %222 {offsets = [0, 32], sizes = [1, 32], strides = [1, 1]} : vector<1x96xf32> to vector<1x32xf32>
    %233 = arith.addf %231, %232 : vector<1x32xf32>
    %234 = arith.negf %233 : vector<1x32xf32>
    %235 = math.exp %234 : vector<1x32xf32>
    %cst_62 = arith.constant 1.000000e+00 : f32
    %236 = vector.broadcast %cst_62 : f32 to vector<1x32xf32>
    %237 = arith.addf %236, %235 : vector<1x32xf32>
    %238 = arith.divf %236, %237 : vector<1x32xf32>
    %239 = vector.extract_strided_slice %220 {offsets = [0, 64], sizes = [1, 32], strides = [1, 1]} : vector<1x96xf32> to vector<1x32xf32>
    %240 = vector.extract_strided_slice %222 {offsets = [0, 64], sizes = [1, 32], strides = [1, 1]} : vector<1x96xf32> to vector<1x32xf32>
    %241 = arith.mulf %230, %240 : vector<1x32xf32>
    %242 = arith.addf %239, %241 : vector<1x32xf32>
    %243 = math.tanh %242 : vector<1x32xf32>
    %cst_63 = arith.constant 1.000000e+00 : f32
    %244 = vector.broadcast %cst_63 : f32 to vector<1x32xf32>
    %245 = arith.subf %244, %238 : vector<1x32xf32>
    %246 = arith.mulf %245, %243 : vector<1x32xf32>
    %247 = arith.mulf %238, %218 : vector<1x32xf32>
    %248 = arith.addf %246, %247 : vector<1x32xf32>
    %c7_64 = arith.constant 7 : index
    %c0_65 = arith.constant 0 : index
    %249 = vector.load %arg5[%c7_64, %c0_65] : memref<8x32xf32, #tpu.memory_space<vmem>>, vector<1x32xf32>
    tpu.vector_store %arg5[%c7_64, %c0_65], %248 {strides = array<i32>} : memref<8x32xf32, #tpu.memory_space<vmem>>, vector<1x32xf32>,
    %c0_66 = arith.constant 0 : index
    %c0_67 = arith.constant 0 : index
    %250 = vector.load %arg5[%c0_66, %c0_67] : memref<8x32xf32, #tpu.memory_space<vmem>>, vector<8x32xf32>
    %c64 = arith.constant 64 : index
    %c0_68 = arith.constant 0 : index
    %251 = vector.load %arg2[%c64, %c0_68] : memref<184x256xf32, #tpu.memory_space<vmem>>, vector<32x8xf32>
    %cst_69 = arith.constant dense<0.000000e+00> : vector<8x8xf32>
    %252 = tpu.matmul %250, %251, %cst_69 {dimension_numbers = #tpu.dot_dimension_numbers<[1], [0], [0], [1], [0, 0, 1, 1], [], []>} : vector<8x32xf32>, vector<32x8xf32>, vector<8x8xf32> -> vector<8x8xf32>
    %c96 = arith.constant 96 : index
    %c0_70 = arith.constant 0 : index
    %253 = vector.load %arg2[%c96, %c0_70] : memref<184x256xf32, #tpu.memory_space<vmem>>, vector<1x8xf32>
    %254 = vector.broadcast %253 : vector<1x8xf32> to vector<8x8xf32>
    %255 = arith.addf %252, %254 : vector<8x8xf32>
    %cst_71 = arith.constant dense<0xFF800000> : vector<8xf32>
    %256 = vector.multi_reduction <maximumf>, %255, %cst_71 [1] : vector<8x8xf32> to vector<8xf32>
    %257 = vector.shape_cast %256 : vector<8xf32> to vector<8x1xf32>
    %c0_72 = arith.constant 0 : index
    %c0_73 = arith.constant 0 : index
    %258 = vector.load %arg1[%c0_72, %c0_73] : memref<1x32xf32, #tpu.memory_space<vmem>>, vector<1x32xf32>
    %c104 = arith.constant 104 : index
    %c0_74 = arith.constant 0 : index
    %259 = vector.load %arg2[%c104, %c0_74] : memref<184x256xf32, #tpu.memory_space<vmem>>, vector<32x256xf32>
    %cst_75 = arith.constant dense<0.000000e+00> : vector<1x256xf32>
    %260 = tpu.matmul %258, %259, %cst_75 {dimension_numbers = #tpu.dot_dimension_numbers<[1], [0], [0], [1], [0, 0, 1, 1], [], []>} : vector<1x32xf32>, vector<32x256xf32>, vector<1x256xf32> -> vector<1x256xf32>
    %c136 = arith.constant 136 : index
    %c0_76 = arith.constant 0 : index
    %261 = vector.load %arg2[%c136, %c0_76] : memref<184x256xf32, #tpu.memory_space<vmem>>, vector<1x256xf32>
    %262 = arith.addf %260, %261 : vector<1x256xf32>
    %263 = math.absf %262 : vector<1x256xf32>
    %264 = vector.extract_strided_slice %263 {offsets = [0, 0], sizes = [1, 32], strides = [1, 1]} : vector<1x256xf32> to vector<1x32xf32>
    %c0_77 = arith.constant 0 : index
    %c0_78 = arith.constant 0 : index
    %265 = vector.load %arg6[%c0_77, %c0_78] : memref<8x32xf32, #tpu.memory_space<vmem>>, vector<1x32xf32>
    tpu.vector_store %arg6[%c0_77, %c0_78], %264 {strides = array<i32>} : memref<8x32xf32, #tpu.memory_space<vmem>>, vector<1x32xf32>,
    %266 = vector.extract_strided_slice %263 {offsets = [0, 32], sizes = [1, 32], strides = [1, 1]} : vector<1x256xf32> to vector<1x32xf32>
    %c1_79 = arith.constant 1 : index
    %c0_80 = arith.constant 0 : index
    %267 = vector.load %arg6[%c1_79, %c0_80] : memref<8x32xf32, #tpu.memory_space<vmem>>, vector<1x32xf32>
    tpu.vector_store %arg6[%c1_79, %c0_80], %266 {strides = array<i32>} : memref<8x32xf32, #tpu.memory_space<vmem>>, vector<1x32xf32>,
    %268 = vector.extract_strided_slice %263 {offsets = [0, 64], sizes = [1, 32], strides = [1, 1]} : vector<1x256xf32> to vector<1x32xf32>
    %c2_81 = arith.constant 2 : index
    %c0_82 = arith.constant 0 : index
    %269 = vector.load %arg6[%c2_81, %c0_82] : memref<8x32xf32, #tpu.memory_space<vmem>>, vector<1x32xf32>
    tpu.vector_store %arg6[%c2_81, %c0_82], %268 {strides = array<i32>} : memref<8x32xf32, #tpu.memory_space<vmem>>, vector<1x32xf32>,
    %270 = vector.extract_strided_slice %263 {offsets = [0, 96], sizes = [1, 32], strides = [1, 1]} : vector<1x256xf32> to vector<1x32xf32>
    %c3_83 = arith.constant 3 : index
    %c0_84 = arith.constant 0 : index
    %271 = vector.load %arg6[%c3_83, %c0_84] : memref<8x32xf32, #tpu.memory_space<vmem>>, vector<1x32xf32>
    tpu.vector_store %arg6[%c3_83, %c0_84], %270 {strides = array<i32>} : memref<8x32xf32, #tpu.memory_space<vmem>>, vector<1x32xf32>,
    %272 = vector.extract_strided_slice %263 {offsets = [0, 128], sizes = [1, 32], strides = [1, 1]} : vector<1x256xf32> to vector<1x32xf32>
    %c4_85 = arith.constant 4 : index
    %c0_86 = arith.constant 0 : index
    %273 = vector.load %arg6[%c4_85, %c0_86] : memref<8x32xf32, #tpu.memory_space<vmem>>, vector<1x32xf32>
    tpu.vector_store %arg6[%c4_85, %c0_86], %272 {strides = array<i32>} : memref<8x32xf32, #tpu.memory_space<vmem>>, vector<1x32xf32>,
    %274 = vector.extract_strided_slice %263 {offsets = [0, 160], sizes = [1, 32], strides = [1, 1]} : vector<1x256xf32> to vector<1x32xf32>
    %c5_87 = arith.constant 5 : index
    %c0_88 = arith.constant 0 : index
    %275 = vector.load %arg6[%c5_87, %c0_88] : memref<8x32xf32, #tpu.memory_space<vmem>>, vector<1x32xf32>
    tpu.vector_store %arg6[%c5_87, %c0_88], %274 {strides = array<i32>} : memref<8x32xf32, #tpu.memory_space<vmem>>, vector<1x32xf32>,
    %276 = vector.extract_strided_slice %263 {offsets = [0, 192], sizes = [1, 32], strides = [1, 1]} : vector<1x256xf32> to vector<1x32xf32>
    %c6_89 = arith.constant 6 : index
    %c0_90 = arith.constant 0 : index
    %277 = vector.load %arg6[%c6_89, %c0_90] : memref<8x32xf32, #tpu.memory_space<vmem>>, vector<1x32xf32>
    tpu.vector_store %arg6[%c6_89, %c0_90], %276 {strides = array<i32>} : memref<8x32xf32, #tpu.memory_space<vmem>>, vector<1x32xf32>,
    %278 = vector.extract_strided_slice %263 {offsets = [0, 224], sizes = [1, 32], strides = [1, 1]} : vector<1x256xf32> to vector<1x32xf32>
    %c7_91 = arith.constant 7 : index
    %c0_92 = arith.constant 0 : index
    %279 = vector.load %arg6[%c7_91, %c0_92] : memref<8x32xf32, #tpu.memory_space<vmem>>, vector<1x32xf32>
    tpu.vector_store %arg6[%c7_91, %c0_92], %278 {strides = array<i32>} : memref<8x32xf32, #tpu.memory_space<vmem>>, vector<1x32xf32>,
    %c0_93 = arith.constant 0 : index
    %c0_94 = arith.constant 0 : index
    %280 = vector.load %arg6[%c0_93, %c0_94] : memref<8x32xf32, #tpu.memory_space<vmem>>, vector<8x32xf32>
    %281 = vector.broadcast %257 : vector<8x1xf32> to vector<8x32xf32>
    %282 = arith.mulf %281, %280 : vector<8x32xf32>
    %cst_95 = arith.constant dense<0.000000e+00> : vector<32xf32>
    %283 = vector.multi_reduction <add>, %282, %cst_95 [0] : vector<8x32xf32> to vector<32xf32>
    %284 = vector.shape_cast %283 : vector<32xf32> to vector<1x32xf32>
    %cst_96 = arith.constant 0.000000e+00 : f32
    %285 = vector.broadcast %cst_96 : f32 to vector<1x32xf32>
    %286 = arith.cmpf ogt, %284, %285 : vector<1x32xf32>
    %cst_97 = arith.constant 0.000000e+00 : f32
    %287 = vector.broadcast %cst_97 : f32 to vector<1x32xf32>
    %288 = arith.minimumf %284, %287 : vector<1x32xf32>
    %289 = math.exp %288 : vector<1x32xf32>
    %cst_98 = arith.constant 1.000000e+00 : f32
    %290 = vector.broadcast %cst_98 : f32 to vector<1x32xf32>
    %291 = arith.subf %289, %290 : vector<1x32xf32>
    %292 = arith.select %286, %284, %291 : vector<1x32xi1>, vector<1x32xf32>
    %c144 = arith.constant 144 : index
    %c0_99 = arith.constant 0 : index
    %293 = vector.load %arg2[%c144, %c0_99] : memref<184x256xf32, #tpu.memory_space<vmem>>, vector<32x32xf32>
    %cst_100 = arith.constant dense<0.000000e+00> : vector<1x32xf32>
    %294 = tpu.matmul %258, %293, %cst_100 {dimension_numbers = #tpu.dot_dimension_numbers<[1], [0], [0], [1], [0, 0, 1, 1], [], []>} : vector<1x32xf32>, vector<32x32xf32>, vector<1x32xf32> -> vector<1x32xf32>
    %c176 = arith.constant 176 : index
    %c0_101 = arith.constant 0 : index
    %295 = vector.load %arg2[%c176, %c0_101] : memref<184x256xf32, #tpu.memory_space<vmem>>, vector<1x32xf32>
    %296 = arith.addf %294, %295 : vector<1x32xf32>
    %297 = math.absf %296 : vector<1x32xf32>
    %298 = arith.mulf %292, %297 : vector<1x32xf32>
    %cst_102 = arith.constant dense<0.000000e+00> : vector<1xf32>
    %299 = vector.multi_reduction <add>, %298, %cst_102 [1] : vector<1x32xf32> to vector<1xf32>
    %300 = vector.shape_cast %299 : vector<1xf32> to vector<1x1xf32>
    %cst_103 = arith.constant 0.000000e+00 : f32
    %301 = vector.broadcast %cst_103 : f32 to vector<1x1xf32>
    %302 = arith.cmpf ogt, %300, %301 : vector<1x1xf32>
    %cst_104 = arith.constant 0.000000e+00 : f32
    %303 = vector.broadcast %cst_104 : f32 to vector<1x1xf32>
    %304 = arith.minimumf %300, %303 : vector<1x1xf32>
    %305 = math.exp %304 : vector<1x1xf32>
    %cst_105 = arith.constant 1.000000e+00 : f32
    %306 = vector.broadcast %cst_105 : f32 to vector<1x1xf32>
    %307 = arith.subf %305, %306 : vector<1x1xf32>
    %308 = arith.select %302, %300, %307 : vector<1x1xi1>, vector<1x1xf32>
    %c0_106 = arith.constant 0 : index
    %c0_107 = arith.constant 0 : index
    %309 = vector.load %arg3[%c0_106, %c0_107] : memref<1x1xf32, #tpu.memory_space<vmem>>, vector<1x1xf32>
    tpu.vector_store %arg3[%c0_106, %c0_107], %308 {strides = array<i32>} : memref<1x1xf32, #tpu.memory_space<vmem>>, vector<1x1xf32>,
    return
  }
}

</mosaic_0001>

<llo_original>
// kernel: tpu_custom_call.1
$region0: #{tpu_custom_call.1}
  #allocation0 [shape = 'u32[]', space=smem, size = 0x4, offset = 0x4, fixed_abs, tag = 'smem constant byte address 0x4 - core index']
  #allocation1 [shape = 'u32[72,128]{1,0:T(1,128)}', space=vmem, size = 0x9000, scoped, tag = 'internal scratch']
  #allocation2 [shape = 'f32[8,96]{1,0:T(8,128)}', space=vmem, size = 0x1000, scoped, tag = 'scratch operand']
  #allocation3 [shape = 'f32[8,32]{1,0:T(8,128)}', space=vmem, size = 0x1000, scoped, tag = 'scratch operand']
  #allocation4 [shape = 'f32[8,32]{1,0:T(8,128)}', space=vmem, size = 0x1000, scoped, tag = 'scratch operand']
  %s0 = inlined_call_operand.hbm [shape: f32[8,16], index: 0, kind: input, shape index: {}]
  %s1 = inlined_call_operand.hbm [shape: f32[1,32], index: 1, kind: input, shape index: {}]
  %s2 = inlined_call_operand.hbm [shape: f32[184,256], index: 2, kind: input, shape index: {}]
  %s3 = inlined_call_operand.hbm [shape: f32[1,1], index: 3, kind: output, shape index: {}]
  %s4 = sld [smem:[#allocation0]]
  $region34: #{tpu_custom_call.1} parent=0
    _
  %s6 = ssub.s32 1, %s4
  %s7 = scalar_select 0, %s6, %s4
  $region1: #{tpu_custom_call.1} parent=0
    #allocation5 [shape = 'u8[4096]{0}', space=vmem, size = 0x1000, scoped, tag = 'input window, operand 0, single buffered']
    #allocation6 [shape = 's32[1]{0}', space=sflag, size = 0x4, scoped, tag = 'scoped memory for tpu_custom_call.1']
    #allocation7 [shape = 's32[1]{0}', space=sflag, size = 0x4, scoped, tag = 'scoped memory for tpu_custom_call.1']
    #allocation8 [shape = 'u8[512]{0}', space=vmem, size = 0x400, scoped, tag = 'input window, operand 1, single buffered']
    #allocation9 [shape = 's32[1]{0}', space=sflag, size = 0x4, scoped, tag = 'scoped memory for tpu_custom_call.1']
    #allocation10 [shape = 'u8[188416]{0}', space=vmem, size = 0x2e000, scoped, tag = 'input window, operand 2, single buffered']
    #allocation11 [shape = 'u8[512]{0}', space=vmem, size = 0x400, scoped, tag = 'output window, operand 0, single buffered']
    %8 = vsyncpa [#allocation6], 0
    %9 = vsyncpa [#allocation9], 0
    %10 = vsyncpa [#allocation7], 0
    // Predicated region
    $region2: #{tpu_custom_call.1} parent=1 // pred_check
      _
    $region3: #{tpu_custom_call.1} parent=1 // pred_check_branch
      %12 = sbr.rel (0) target = $region5
    $region4: #{tpu_custom_call.1} parent=1 // pred_region
      %14 = vsyncadd [#allocation6], 0
      %s16 = sshll.u32 %s0, 4
      %s17 = int_to_ptr.hbm [resolvable:$true] %s16
      %s18 = sshll.u32 [#allocation5], 4
      %s19 = int_to_ptr.vmem [resolvable:$true] %s18
      %21 = dma.hbm_to_vmem [thread:$0]  %s17, 128, %s19, [#allocation6]
    $region5: #{tpu_custom_call.1} parent=1 // pred_fallthru
      _
    // Predicated region
    $region6: #{tpu_custom_call.1} parent=1 // pred_check
      _
    $region7: #{tpu_custom_call.1} parent=1 // pred_check_branch
      %23 = sbr.rel (0) target = $region9
    $region8: #{tpu_custom_call.1} parent=1 // pred_region
      %25 = vsyncadd [#allocation9], 0
      %s27 = sshll.u32 %s1, 4
      %s28 = int_to_ptr.hbm [resolvable:$true] %s27
      %s29 = sshll.u32 [#allocation8], 4
      %s30 = int_to_ptr.vmem [resolvable:$true] %s29
      %32 = dma.hbm_to_vmem [thread:$0]  %s28, 16, %s30, [#allocation9]
    $region9: #{tpu_custom_call.1} parent=1 // pred_fallthru
      _
    // Predicated region
    $region10: #{tpu_custom_call.1} parent=1 // pred_check
      _
    $region11: #{tpu_custom_call.1} parent=1 // pred_check_branch
      %34 = sbr.rel (0) target = $region13
    $region12: #{tpu_custom_call.1} parent=1 // pred_region
      %36 = vsyncadd [#allocation9], 0
      %s37 = sshll.u32 %s2, 4
      %s38 = int_to_ptr.hbm [resolvable:$true] %s37
      %s39 = sshll.u32 [#allocation10], 4
      %s40 = int_to_ptr.vmem [resolvable:$true] %s39
      %45 = dma.hbm_to_vmem [thread:$0]  %s38, 5888, %s40, [#allocation9], 256, 256, 16
    $region13: #{tpu_custom_call.1} parent=1 // pred_fallthru
      _
    // Predicated region
    $region14: #{tpu_custom_call.1} parent=1 // pred_check
      _
    $region15: #{tpu_custom_call.1} parent=1 // pred_check_branch
      %47 = sbr.rel (0) target = $region17
    $region16: #{tpu_custom_call.1} parent=1 // pred_region
      %49 = dma.done [#allocation6], 128
    $region17: #{tpu_custom_call.1} parent=1 // pred_fallthru
      _
    // Predicated region
    $region18: #{tpu_custom_call.1} parent=1 // pred_check
      _
    $region19: #{tpu_custom_call.1} parent=1 // pred_check_branch
      %51 = sbr.rel (0) target = $region21
    $region20: #{tpu_custom_call.1} parent=1 // pred_region
      %53 = dma.done [#allocation9], 16
    $region21: #{tpu_custom_call.1} parent=1 // pred_fallthru
      _
    // Predicated region
    $region22: #{tpu_custom_call.1} parent=1 // pred_check
      _
    $region23: #{tpu_custom_call.1} parent=1 // pred_check_branch
      %55 = sbr.rel (0) target = $region25
    $region24: #{tpu_custom_call.1} parent=1 // pred_region
      %57 = dma.done [#allocation9], 5888
    $region25: #{tpu_custom_call.1} parent=1 // pred_fallthru
      _
    %v58 = vld [vmem:[#allocation5] sm:$0xff]
    %v59 = vld [vmem:[#allocation10] sm:$0xff]
    %v60 = vld [vmem:[#allocation10 + $0x10] sm:$0xff]
    %v61 = vld [vmem:[#allocation10 + $0x20] ss:$0 sm:$0xff]
    %vm62 = vcmask 130048
    %v64 = vsel %vm62, %v58, 0
    %66 = vmatpush.msra.mxu0 0.0
    %67 = vmatpush.msra.mxu0 0.0
    %68 = vmatpush.msra.mxu0 0.0
    %69 = vmatpush.msra.mxu0 0.0
    %70 = vmatpush.msra.mxu0 0.0
    %71 = vmatpush.msra.mxu0 0.0
    %72 = vmatpush.msra.mxu0 0.0
    %73 = vmatpush.msra.mxu0 0.0
    %74 = vmatpush.msra.mxu0 0.0
    %75 = vmatpush.msra.mxu0 0.0
    %76 = vmatpush.msra.mxu0 0.0
    %77 = vmatpush.msra.mxu0 0.0
    %78 = vmatpush.msra.mxu0 0.0
    %79 = vmatpush.msra.mxu0 0.0
    %80 = vmatpush.msra.mxu0 %v60
    %81 = vmatpush.msra.mxu0 %v59
    %82 = vmatmul.f32.gmra.mxu0 %v64
    %v83 = vpop.f32.mrf.mxu0
    %v84 = vadd.f32 %v61, %v83
    %85 = vdwg.mxu0
    %vm86 = vcmask 785408
    %87 = vst.msk [vmem:[#allocation2] sm:$0xff] %vm86, %v84
    %v88 = vld [vmem:[#allocation10 + $0x30] sm:$0xff]
    %v89 = vld [vmem:[#allocation10 + $0x40] sm:$0xff]
    %v90 = vld [vmem:[#allocation10 + $0x50] sm:$0xff]
    %v91 = vld [vmem:[#allocation10 + $0x60] sm:$0xff]
    %v92 = vld [vmem:[#allocation10 + $0x70] ss:$0 sm:$0xff]
    %v93 = vld [vmem:[#allocation2] sm:$0x1]
    %vm94 = vcmask 261120
    %v96 = vsel %vm94, 0.0, 0
    %98 = vmatpush.msra.mxu0 0.0
    %99 = vmatpush.msra.mxu0 0.0
    %100 = vmatpush.msra.mxu0 0.0
    %101 = vmatpush.msra.mxu0 0.0
    %102 = vmatpush.msra.mxu0 0.0
    %103 = vmatpush.msra.mxu0 0.0
    %104 = vmatpush.msra.mxu0 0.0
    %105 = vmatpush.msra.mxu0 0.0
    %106 = vmatpush.msra.mxu0 0.0
    %107 = vmatpush.msra.mxu0 0.0
    %108 = vmatpush.msra.mxu0 0.0
    %109 = vmatpush.msra.mxu0 0.0
    %110 = vmatpush.msra.mxu0 %v91
    %111 = vmatpush.msra.mxu0 %v90
    %112 = vmatpush.msra.mxu0 %v89
    %113 = vmatpush.msra.mxu0 %v88
    %114 = vmatmul.f32.gmra.mxu0 %v96
    %v115 = vpop.f32.mrf.mxu0
    %v116 = vadd.f32 %v92, %v115
    %117 = vdwg.mxu0
    %v118 = vadd.f32 %v93, %v116
    %v119 = vxor.u32 %v118, 2147483648
    %v120 = vmul.f32 %v119, 1.442695
    %v121 = vpow.pop %v120
    %v122 = vadd.f32 %v121, 1.0
    %v123 = vrcp.pop %v122
    %v124 = vmul.f32 %v122, %v123
    %v125 = vsub.f32 1.0, %v124
    %v126 = vmul.f32 %v123, %v125
    %v127 = vadd.f32 %v123, %v126
    %vm128 = vweird.f32 %v122
    %vm129 = vweird.f32 %v123
    %vm130 = vmor %vm128, %vm129
    %v131 = vsel %vm130, %v123, %v127
    %v132 = vand.u32 2147483647, %v122
    %vm133 = vcmp.eq.f32.partialorder %v132, 8.507059e+37
    %v134 = vand.u32 %v122, 2147483648
    %v135 = vor.u32 1.1754944e-38, %v134
    %v136 = vsel %vm133, %v135, %v131
    %v137 = vmul.f32 1.0, %v136
    %139 = vrot.lane.b32.xlu0 %v116, 64
    %v140 = vpop.permute.xlu0 %139
    %v142 = vmul.f32 %v137, %v140
    %144 = vrot.lane.b32.xlu0 %v142, 64
    %v145 = vpop.permute.xlu0 %144
    %v147 = vadd.f32 %v93, %v145
    %v148 = vtanh.pop %v147
    %v149 = vsub.f32 1.0, %v137
    %151 = vrot.lane.b32.xlu0 %v148, 96
    %v152 = vpop.permute.xlu0 %151
    %v154 = vmul.f32 %v149, %v152
    %v155 = vmul.f32 %v137, 0.0
    %v156 = vadd.f32 %v154, %v155
    %158 = vrot.lane.b32.xlu0 %v156, 96
    %v159 = vpop.permute.xlu0 %158
    %vm161 = vcmask 253952
    %162 = vst.msk [vmem:[#allocation3] sm:$0x1] %vm161, %v159
    %v163 = vld [vmem:[#allocation2 + $0x1] sm:$0x1]
    %v164 = vsel %vm94, %v159, 0
    %166 = vmatpush.msra.mxu0 0.0
    %167 = vmatpush.msra.mxu0 0.0
    %168 = vmatpush.msra.mxu0 0.0
    %169 = vmatpush.msra.mxu0 0.0
    %170 = vmatpush.msra.mxu0 0.0
    %171 = vmatpush.msra.mxu0 0.0
    %172 = vmatpush.msra.mxu0 0.0
    %173 = vmatpush.msra.mxu0 0.0
    %174 = vmatpush.msra.mxu0 0.0
    %175 = vmatpush.msra.mxu0 0.0
    %176 = vmatpush.msra.mxu0 0.0
    %177 = vmatpush.msra.mxu0 0.0
    %178 = vmatpush.msra.mxu0 %v91
    %179 = vmatpush.msra.mxu0 %v90
    %180 = vmatpush.msra.mxu0 %v89
    %181 = vmatpush.msra.mxu0 %v88
    %182 = vmatmul.f32.gmra.mxu0 %v164
    %v183 = vpop.f32.mrf.mxu0
    %v184 = vadd.f32 %v92, %v183
    %185 = vdwg.mxu0
    %v186 = vadd.f32 %v163, %v184
    %v187 = vxor.u32 %v186, 2147483648
    %v188 = vmul.f32 %v187, 1.442695
    %v189 = vpow.pop %v188
    %v190 = vadd.f32 %v189, 1.0
    %v191 = vrcp.pop %v190
    %v192 = vmul.f32 %v190, %v191
    %v193 = vsub.f32 1.0, %v192
    %v194 = vmul.f32 %v191, %v193
    %v195 = vadd.f32 %v191, %v194
    %vm196 = vweird.f32 %v190
    %vm197 = vweird.f32 %v191
    %vm198 = vmor %vm196, %vm197
    %v199 = vsel %vm198, %v191, %v195
    %v200 = vand.u32 2147483647, %v190
    %vm201 = vcmp.eq.f32.partialorder %v200, 8.507059e+37
    %v202 = vand.u32 %v190, 2147483648
    %v203 = vor.u32 1.1754944e-38, %v202
    %v204 = vsel %vm201, %v203, %v199
    %v205 = vmul.f32 1.0, %v204
    %207 = vrot.lane.b32.xlu0 %v184, 64
    %v208 = vpop.permute.xlu0 %207
    %v210 = vmul.f32 %v205, %v208
    %212 = vrot.lane.b32.xlu0 %v210, 64
    %v213 = vpop.permute.xlu0 %212
    %v215 = vadd.f32 %v163, %v213
    %v216 = vtanh.pop %v215
    %v217 = vsub.f32 1.0, %v205
    %219 = vrot.lane.b32.xlu0 %v216, 96
    %v220 = vpop.permute.xlu0 %219
    %v222 = vmul.f32 %v217, %v220
    %v223 = vmul.f32 %v205, %v156
    %v224 = vadd.f32 %v222, %v223
    %226 = vrot.lane.b32.xlu0 %v224, 96
    %v227 = vpop.permute.xlu0 %226
    %229 = vst.msk [vmem:[#allocation3 + $0x1] sm:$0x1] %vm161, %v227
    %v230 = vld [vmem:[#allocation2 + $0x2] sm:$0x1]
    %v231 = vsel %vm94, %v227, 0
    %233 = vmatpush.msra.mxu0 0.0
    %234 = vmatpush.msra.mxu0 0.0
    %235 = vmatpush.msra.mxu0 0.0
    %236 = vmatpush.msra.mxu0 0.0
    %237 = vmatpush.msra.mxu0 0.0
    %238 = vmatpush.msra.mxu0 0.0
    %239 = vmatpush.msra.mxu0 0.0
    %240 = vmatpush.msra.mxu0 0.0
    %241 = vmatpush.msra.mxu0 0.0
    %242 = vmatpush.msra.mxu0 0.0
    %243 = vmatpush.msra.mxu0 0.0
    %244 = vmatpush.msra.mxu0 0.0
    %245 = vmatpush.msra.mxu0 %v91
    %246 = vmatpush.msra.mxu0 %v90
    %247 = vmatpush.msra.mxu0 %v89
    %248 = vmatpush.msra.mxu0 %v88
    %249 = vmatmul.f32.gmra.mxu0 %v231
    %v250 = vpop.f32.mrf.mxu0
    %v251 = vadd.f32 %v92, %v250
    %252 = vdwg.mxu0
    %v253 = vadd.f32 %v230, %v251
    %v254 = vxor.u32 %v253, 2147483648
    %v255 = vmul.f32 %v254, 1.442695
    %v256 = vpow.pop %v255
    %v257 = vadd.f32 %v256, 1.0
    %v258 = vrcp.pop %v257
    %v259 = vmul.f32 %v257, %v258
    %v260 = vsub.f32 1.0, %v259
    %v261 = vmul.f32 %v258, %v260
    %v262 = vadd.f32 %v258, %v261
    %vm263 = vweird.f32 %v257
    %vm264 = vweird.f32 %v258
    %vm265 = vmor %vm263, %vm264
    %v266 = vsel %vm265, %v258, %v262
    %v267 = vand.u32 2147483647, %v257
    %vm268 = vcmp.eq.f32.partialorder %v267, 8.507059e+37
    %v269 = vand.u32 %v257, 2147483648
    %v270 = vor.u32 1.1754944e-38, %v269
    %v271 = vsel %vm268, %v270, %v266
    %v272 = vmul.f32 1.0, %v271
    %274 = vrot.lane.b32.xlu0 %v251, 64
    %v275 = vpop.permute.xlu0 %274
    %v277 = vmul.f32 %v272, %v275
    %279 = vrot.lane.b32.xlu0 %v277, 64
    %v280 = vpop.permute.xlu0 %279
    %v282 = vadd.f32 %v230, %v280
    %v283 = vtanh.pop %v282
    %v284 = vsub.f32 1.0, %v272
    %286 = vrot.lane.b32.xlu0 %v283, 96
    %v287 = vpop.permute.xlu0 %286
    %v289 = vmul.f32 %v284, %v287
    %v290 = vmul.f32 %v272, %v224
    %v291 = vadd.f32 %v289, %v290
    %293 = vrot.lane.b32.xlu0 %v291, 96
    %v294 = vpop.permute.xlu0 %293
    %296 = vst.msk [vmem:[#allocation3 + $0x2] sm:$0x1] %vm161, %v294
    %v297 = vld [vmem:[#allocation2 + $0x3] sm:$0x1]
    %v298 = vsel %vm94, %v294, 0
    %300 = vmatpush.msra.mxu0 0.0
    %301 = vmatpush.msra.mxu0 0.0
    %302 = vmatpush.msra.mxu0 0.0
    %303 = vmatpush.msra.mxu0 0.0
    %304 = vmatpush.msra.mxu0 0.0
    %305 = vmatpush.msra.mxu0 0.0
    %306 = vmatpush.msra.mxu0 0.0
    %307 = vmatpush.msra.mxu0 0.0
    %308 = vmatpush.msra.mxu0 0.0
    %309 = vmatpush.msra.mxu0 0.0
    %310 = vmatpush.msra.mxu0 0.0
    %311 = vmatpush.msra.mxu0 0.0
    %312 = vmatpush.msra.mxu0 %v91
    %313 = vmatpush.msra.mxu0 %v90
    %314 = vmatpush.msra.mxu0 %v89
    %315 = vmatpush.msra.mxu0 %v88
    %316 = vmatmul.f32.gmra.mxu0 %v298
    %v317 = vpop.f32.mrf.mxu0
    %v318 = vadd.f32 %v92, %v317
    %319 = vdwg.mxu0
    %v320 = vadd.f32 %v297, %v318
    %v321 = vxor.u32 %v320, 2147483648
    %v322 = vmul.f32 %v321, 1.442695
    %v323 = vpow.pop %v322
    %v324 = vadd.f32 %v323, 1.0
    %v325 = vrcp.pop %v324
    %v326 = vmul.f32 %v324, %v325
    %v327 = vsub.f32 1.0, %v326
    %v328 = vmul.f32 %v325, %v327
    %v329 = vadd.f32 %v325, %v328
    %vm330 = vweird.f32 %v324
    %vm331 = vweird.f32 %v325
    %vm332 = vmor %vm330, %vm331
    %v333 = vsel %vm332, %v325, %v329
    %v334 = vand.u32 2147483647, %v324
    %vm335 = vcmp.eq.f32.partialorder %v334, 8.507059e+37
    %v336 = vand.u32 %v324, 2147483648
    %v337 = vor.u32 1.1754944e-38, %v336
    %v338 = vsel %vm335, %v337, %v333
    %v339 = vmul.f32 1.0, %v338
    %341 = vrot.lane.b32.xlu0 %v318, 64
    %v342 = vpop.permute.xlu0 %341
    %v344 = vmul.f32 %v339, %v342
    %346 = vrot.lane.b32.xlu0 %v344, 64
    %v347 = vpop.permute.xlu0 %346
    %v349 = vadd.f32 %v297, %v347
    %v350 = vtanh.pop %v349
    %v351 = vsub.f32 1.0, %v339
    %353 = vrot.lane.b32.xlu0 %v350, 96
    %v354 = vpop.permute.xlu0 %353
    %v356 = vmul.f32 %v351, %v354
    %v357 = vmul.f32 %v339, %v291
    %v358 = vadd.f32 %v356, %v357
    %360 = vrot.lane.b32.xlu0 %v358, 96
    %v361 = vpop.permute.xlu0 %360
    %363 = vst.msk [vmem:[#allocation3 + $0x3] sm:$0x1] %vm161, %v361
    %v364 = vld [vmem:[#allocation2 + $0x4] sm:$0x1]
    %v365 = vsel %vm94, %v361, 0
    %367 = vmatpush.msra.mxu0 0.0
    %368 = vmatpush.msra.mxu0 0.0
    %369 = vmatpush.msra.mxu0 0.0
    %370 = vmatpush.msra.mxu0 0.0
    %371 = vmatpush.msra.mxu0 0.0
    %372 = vmatpush.msra.mxu0 0.0
    %373 = vmatpush.msra.mxu0 0.0
    %374 = vmatpush.msra.mxu0 0.0
    %375 = vmatpush.msra.mxu0 0.0
    %376 = vmatpush.msra.mxu0 0.0
    %377 = vmatpush.msra.mxu0 0.0
    %378 = vmatpush.msra.mxu0 0.0
    %379 = vmatpush.msra.mxu0 %v91
    %380 = vmatpush.msra.mxu0 %v90
    %381 = vmatpush.msra.mxu0 %v89
    %382 = vmatpush.msra.mxu0 %v88
    %383 = vmatmul.f32.gmra.mxu0 %v365
    %v384 = vpop.f32.mrf.mxu0
    %v385 = vadd.f32 %v92, %v384
    %386 = vdwg.mxu0
    %v387 = vadd.f32 %v364, %v385
    %v388 = vxor.u32 %v387, 2147483648
    %v389 = vmul.f32 %v388, 1.442695
    %v390 = vpow.pop %v389
    %v391 = vadd.f32 %v390, 1.0
    %v392 = vrcp.pop %v391
    %v393 = vmul.f32 %v391, %v392
    %v394 = vsub.f32 1.0, %v393
    %v395 = vmul.f32 %v392, %v394
    %v396 = vadd.f32 %v392, %v395
    %vm397 = vweird.f32 %v391
    %vm398 = vweird.f32 %v392
    %vm399 = vmor %vm397, %vm398
    %v400 = vsel %vm399, %v392, %v396
    %v401 = vand.u32 2147483647, %v391
    %vm402 = vcmp.eq.f32.partialorder %v401, 8.507059e+37
    %v403 = vand.u32 %v391, 2147483648
    %v404 = vor.u32 1.1754944e-38, %v403
    %v405 = vsel %vm402, %v404, %v400
    %v406 = vmul.f32 1.0, %v405
    %408 = vrot.lane.b32.xlu0 %v385, 64
    %v409 = vpop.permute.xlu0 %408
    %v411 = vmul.f32 %v406, %v409
    %413 = vrot.lane.b32.xlu0 %v411, 64
    %v414 = vpop.permute.xlu0 %413
    %v416 = vadd.f32 %v364, %v414
    %v417 = vtanh.pop %v416
    %v418 = vsub.f32 1.0, %v406
    %420 = vrot.lane.b32.xlu0 %v417, 96
    %v421 = vpop.permute.xlu0 %420
    %v423 = vmul.f32 %v418, %v421
    %v424 = vmul.f32 %v406, %v358
    %v425 = vadd.f32 %v423, %v424
    %427 = vrot.lane.b32.xlu0 %v425, 96
    %v428 = vpop.permute.xlu0 %427
    %430 = vst.msk [vmem:[#allocation3 + $0x4] sm:$0x1] %vm161, %v428
    %v431 = vld [vmem:[#allocation2 + $0x5] sm:$0x1]
    %v432 = vsel %vm94, %v428, 0
    %434 = vmatpush.msra.mxu0 0.0
    %435 = vmatpush.msra.mxu0 0.0
    %436 = vmatpush.msra.mxu0 0.0
    %437 = vmatpush.msra.mxu0 0.0
    %438 = vmatpush.msra.mxu0 0.0
    %439 = vmatpush.msra.mxu0 0.0
    %440 = vmatpush.msra.mxu0 0.0
    %441 = vmatpush.msra.mxu0 0.0
    %442 = vmatpush.msra.mxu0 0.0
    %443 = vmatpush.msra.mxu0 0.0
    %444 = vmatpush.msra.mxu0 0.0
    %445 = vmatpush.msra.mxu0 0.0
    %446 = vmatpush.msra.mxu0 %v91
    %447 = vmatpush.msra.mxu0 %v90
    %448 = vmatpush.msra.mxu0 %v89
    %449 = vmatpush.msra.mxu0 %v88
    %450 = vmatmul.f32.gmra.mxu0 %v432
    %v451 = vpop.f32.mrf.mxu0
    %v452 = vadd.f32 %v92, %v451
    %453 = vdwg.mxu0
    %v454 = vadd.f32 %v431, %v452
    %v455 = vxor.u32 %v454, 2147483648
    %v456 = vmul.f32 %v455, 1.442695
    %v457 = vpow.pop %v456
    %v458 = vadd.f32 %v457, 1.0
    %v459 = vrcp.pop %v458
    %v460 = vmul.f32 %v458, %v459
    %v461 = vsub.f32 1.0, %v460
    %v462 = vmul.f32 %v459, %v461
    %v463 = vadd.f32 %v459, %v462
    %vm464 = vweird.f32 %v458
    %vm465 = vweird.f32 %v459
    %vm466 = vmor %vm464, %vm465
    %v467 = vsel %vm466, %v459, %v463
    %v468 = vand.u32 2147483647, %v458
    %vm469 = vcmp.eq.f32.partialorder %v468, 8.507059e+37
    %v470 = vand.u32 %v458, 2147483648
    %v471 = vor.u32 1.1754944e-38, %v470
    %v472 = vsel %vm469, %v471, %v467
    %v473 = vmul.f32 1.0, %v472
    %475 = vrot.lane.b32.xlu0 %v452, 64
    %v476 = vpop.permute.xlu0 %475
    %v478 = vmul.f32 %v473, %v476
    %480 = vrot.lane.b32.xlu0 %v478, 64
    %v481 = vpop.permute.xlu0 %480
    %v483 = vadd.f32 %v431, %v481
    %v484 = vtanh.pop %v483
    %v485 = vsub.f32 1.0, %v473
    %487 = vrot.lane.b32.xlu0 %v484, 96
    %v488 = vpop.permute.xlu0 %487
    %v490 = vmul.f32 %v485, %v488
    %v491 = vmul.f32 %v473, %v425
    %v492 = vadd.f32 %v490, %v491
    %494 = vrot.lane.b32.xlu0 %v492, 96
    %v495 = vpop.permute.xlu0 %494
    %497 = vst.msk [vmem:[#allocation3 + $0x5] sm:$0x1] %vm161, %v495
    %v498 = vld [vmem:[#allocation2 + $0x6] sm:$0x1]
    %v499 = vsel %vm94, %v495, 0
    %501 = vmatpush.msra.mxu0 0.0
    %502 = vmatpush.msra.mxu0 0.0
    %503 = vmatpush.msra.mxu0 0.0
    %504 = vmatpush.msra.mxu0 0.0
    %505 = vmatpush.msra.mxu0 0.0
    %506 = vmatpush.msra.mxu0 0.0
    %507 = vmatpush.msra.mxu0 0.0
    %508 = vmatpush.msra.mxu0 0.0
    %509 = vmatpush.msra.mxu0 0.0
    %510 = vmatpush.msra.mxu0 0.0
    %511 = vmatpush.msra.mxu0 0.0
    %512 = vmatpush.msra.mxu0 0.0
    %513 = vmatpush.msra.mxu0 %v91
    %514 = vmatpush.msra.mxu0 %v90
    %515 = vmatpush.msra.mxu0 %v89
    %516 = vmatpush.msra.mxu0 %v88
    %517 = vmatmul.f32.gmra.mxu0 %v499
    %v518 = vpop.f32.mrf.mxu0
    %v519 = vadd.f32 %v92, %v518
    %520 = vdwg.mxu0
    %v521 = vadd.f32 %v498, %v519
    %v522 = vxor.u32 %v521, 2147483648
    %v523 = vmul.f32 %v522, 1.442695
    %v524 = vpow.pop %v523
    %v525 = vadd.f32 %v524, 1.0
    %v526 = vrcp.pop %v525
    %v527 = vmul.f32 %v525, %v526
    %v528 = vsub.f32 1.0, %v527
    %v529 = vmul.f32 %v526, %v528
    %v530 = vadd.f32 %v526, %v529
    %vm531 = vweird.f32 %v525
    %vm532 = vweird.f32 %v526
    %vm533 = vmor %vm531, %vm532
    %v534 = vsel %vm533, %v526, %v530
    %v535 = vand.u32 2147483647, %v525
    %vm536 = vcmp.eq.f32.partialorder %v535, 8.507059e+37
    %v537 = vand.u32 %v525, 2147483648
    %v538 = vor.u32 1.1754944e-38, %v537
    %v539 = vsel %vm536, %v538, %v534
    %v540 = vmul.f32 1.0, %v539
    %542 = vrot.lane.b32.xlu0 %v519, 64
    %v543 = vpop.permute.xlu0 %542
    %v545 = vmul.f32 %v540, %v543
    %547 = vrot.lane.b32.xlu0 %v545, 64
    %v548 = vpop.permute.xlu0 %547
    %v550 = vadd.f32 %v498, %v548
    %v551 = vtanh.pop %v550
    %v552 = vsub.f32 1.0, %v540
    %554 = vrot.lane.b32.xlu0 %v551, 96
    %v555 = vpop.permute.xlu0 %554
    %v557 = vmul.f32 %v552, %v555
    %v558 = vmul.f32 %v540, %v492
    %v559 = vadd.f32 %v557, %v558
    %561 = vrot.lane.b32.xlu0 %v559, 96
    %v562 = vpop.permute.xlu0 %561
    %564 = vst.msk [vmem:[#allocation3 + $0x6] sm:$0x1] %vm161, %v562
    %v565 = vld [vmem:[#allocation2 + $0x7] sm:$0x1]
    %v566 = vsel %vm94, %v562, 0
    %568 = vmatpush.msra.mxu0 0.0
    %569 = vmatpush.msra.mxu0 0.0
    %570 = vmatpush.msra.mxu0 0.0
    %571 = vmatpush.msra.mxu0 0.0
    %572 = vmatpush.msra.mxu0 0.0
    %573 = vmatpush.msra.mxu0 0.0
    %574 = vmatpush.msra.mxu0 0.0
    %575 = vmatpush.msra.mxu0 0.0
    %576 = vmatpush.msra.mxu0 0.0
    %577 = vmatpush.msra.mxu0 0.0
    %578 = vmatpush.msra.mxu0 0.0
    %579 = vmatpush.msra.mxu0 0.0
    %580 = vmatpush.msra.mxu0 %v91
    %581 = vmatpush.msra.mxu0 %v90
    %582 = vmatpush.msra.mxu0 %v89
    %583 = vmatpush.msra.mxu0 %v88
    %584 = vmatmul.f32.gmra.mxu0 %v566
    %v585 = vpop.f32.mrf.mxu0
    %v586 = vadd.f32 %v92, %v585
    %587 = vdwg.mxu0
    %v588 = vadd.f32 %v565, %v586
    %v589 = vxor.u32 %v588, 2147483648
    %v590 = vmul.f32 %v589, 1.442695
    %v591 = vpow.pop %v590
    %v592 = vadd.f32 %v591, 1.0
    %v593 = vrcp.pop %v592
    %v594 = vmul.f32 %v592, %v593
    %v595 = vsub.f32 1.0, %v594
    %v596 = vmul.f32 %v593, %v595
    %v597 = vadd.f32 %v593, %v596
    %vm598 = vweird.f32 %v592
    %vm599 = vweird.f32 %v593
    %vm600 = vmor %vm598, %vm599
    %v601 = vsel %vm600, %v593, %v597
    %v602 = vand.u32 2147483647, %v592
    %vm603 = vcmp.eq.f32.partialorder %v602, 8.507059e+37
    %v604 = vand.u32 %v592, 2147483648
    %v605 = vor.u32 1.1754944e-38, %v604
    %v606 = vsel %vm603, %v605, %v601
    %v607 = vmul.f32 1.0, %v606
    %609 = vrot.lane.b32.xlu0 %v586, 64
    %v610 = vpop.permute.xlu0 %609
    %v612 = vmul.f32 %v607, %v610
    %614 = vrot.lane.b32.xlu0 %v612, 64
    %v615 = vpop.permute.xlu0 %614
    %v617 = vadd.f32 %v565, %v615
    %v618 = vtanh.pop %v617
    %v619 = vsub.f32 1.0, %v607
    %621 = vrot.lane.b32.xlu0 %v618, 96
    %v622 = vpop.permute.xlu0 %621
    %v624 = vmul.f32 %v619, %v622
    %v625 = vmul.f32 %v607, %v559
    %v626 = vadd.f32 %v624, %v625
    %628 = vrot.lane.b32.xlu0 %v626, 96
    %v629 = vpop.permute.xlu0 %628
    %631 = vst.msk [vmem:[#allocation3 + $0x7] sm:$0x1] %vm161, %v629
    %v632 = vld [vmem:[#allocation3] sm:$0xff]
    %v633 = vld [vmem:[#allocation10 + $0x80] sm:$0xff]
    %v634 = vld [vmem:[#allocation10 + $0x90] sm:$0xff]
    %v635 = vld [vmem:[#allocation10 + $0xa0] sm:$0xff]
    %v636 = vld [vmem:[#allocation10 + $0xb0] sm:$0xff]
    %v637 = vld [vmem:[#allocation10 + $0xc0] ss:$0 sm:$0xff]
    %v639 = vsel %vm94, %v632, 0
    %641 = vmatpush.msra.mxu0 0.0
    %642 = vmatpush.msra.mxu0 0.0
    %643 = vmatpush.msra.mxu0 0.0
    %644 = vmatpush.msra.mxu0 0.0
    %645 = vmatpush.msra.mxu0 0.0
    %646 = vmatpush.msra.mxu0 0.0
    %647 = vmatpush.msra.mxu0 0.0
    %648 = vmatpush.msra.mxu0 0.0
    %649 = vmatpush.msra.mxu0 0.0
    %650 = vmatpush.msra.mxu0 0.0
    %651 = vmatpush.msra.mxu0 0.0
    %652 = vmatpush.msra.mxu0 0.0
    %653 = vmatpush.msra.mxu0 %v636
    %654 = vmatpush.msra.mxu0 %v635
    %655 = vmatpush.msra.mxu0 %v634
    %656 = vmatpush.msra.mxu0 %v633
    %657 = vmatmul.f32.gmra.mxu0 %v639
    %v658 = vpop.f32.mrf.mxu0
    %v659 = vadd.f32 %v637, %v658
    %660 = vdwg.mxu0
    %vm661 = vcmask 64512
    %v662 = vsel %vm661, %v659, -inf
    %663 = vmax.xlane.f32.xlu0 %v662
    %v664 = vpop.xlane.xlu0 %663
    %v665 = vld [vmem:[#allocation8] sm:$0x1]
    %v666 = vld [vmem:[#allocation10 + $0xd0] sm:$0xff]
    %v667 = vld [vmem:[#allocation10 + $0xd8] sm:$0xff]
    %v668 = vld [vmem:[#allocation10 + $0xe0] sm:$0xff]
    %v669 = vld [vmem:[#allocation10 + $0xe8] sm:$0xff]
    %v670 = vld [vmem:[#allocation10 + $0xf0] sm:$0xff]
    %v671 = vld [vmem:[#allocation10 + $0xf8] sm:$0xff]
    %v672 = vld [vmem:[#allocation10 + $0x100] sm:$0xff]
    %v673 = vld [vmem:[#allocation10 + $0x108] sm:$0xff]
    %s674 = scalar_lea.vmem [#allocation10], 272
    %v675 = vld [vmem:[%s674] ss:$8 sm:$0x3]
    %v677 = vperm.slane %v675, 0
    %v678 = vperm.slane %v675, 1
    %v682 = vsel %vm94, %v665, 0
    %684 = vmatpush.msra.mxu0 0.0
    %685 = vmatpush.msra.mxu0 0.0
    %686 = vmatpush.msra.mxu0 0.0
    %687 = vmatpush.msra.mxu0 0.0
    %688 = vmatpush.msra.mxu0 0.0
    %689 = vmatpush.msra.mxu0 0.0
    %690 = vmatpush.msra.mxu0 0.0
    %691 = vmatpush.msra.mxu0 0.0
    %692 = vmatpush.msra.mxu0 0.0
    %693 = vmatpush.msra.mxu0 0.0
    %694 = vmatpush.msra.mxu0 0.0
    %695 = vmatpush.msra.mxu0 0.0
    %696 = vmatpush.msra.mxu0 %v672
    %697 = vmatpush.msra.mxu0 %v670
    %698 = vmatpush.msra.mxu0 %v668
    %699 = vmatpush.msra.mxu0 %v666
    %700 = vmatmul.f32.gmra.mxu0 %v682
    %v701 = vpop.f32.mrf.mxu0
    %v702 = vadd.f32 %v677, %v701
    %703 = vdwg.mxu0
    %704 = vmatpush.msra.mxu0 0.0
    %705 = vmatpush.msra.mxu0 0.0
    %706 = vmatpush.msra.mxu0 0.0
    %707 = vmatpush.msra.mxu0 0.0
    %708 = vmatpush.msra.mxu0 0.0
    %709 = vmatpush.msra.mxu0 0.0
    %710 = vmatpush.msra.mxu0 0.0
    %711 = vmatpush.msra.mxu0 0.0
    %712 = vmatpush.msra.mxu0 0.0
    %713 = vmatpush.msra.mxu0 0.0
    %714 = vmatpush.msra.mxu0 0.0
    %715 = vmatpush.msra.mxu0 0.0
    %716 = vmatpush.msra.mxu0 %v673
    %717 = vmatpush.msra.mxu0 %v671
    %718 = vmatpush.msra.mxu0 %v669
    %719 = vmatpush.msra.mxu0 %v667
    %720 = vmatmul.f32.gmra.mxu0 %v682
    %v721 = vpop.f32.mrf.mxu0
    %v722 = vadd.f32 %v678, %v721
    %723 = vdwg.mxu0
    %v724 = vand.u32 2147483647, %v702
    %v725 = vand.u32 2147483647, %v722
    %726 = vst.msk [vmem:[#allocation4] sm:$0x1] %vm161, %v724
    %728 = vrot.lane.b32.xlu0 %v724, 96
    %v729 = vpop.permute.xlu0 %728
    %731 = vst.msk [vmem:[#allocation4 + $0x1] sm:$0x1] %vm161, %v729
    %732 = vrot.lane.b32.xlu0 %v724, 64
    %v733 = vpop.permute.xlu0 %732
    %735 = vst.msk [vmem:[#allocation4 + $0x2] sm:$0x1] %vm161, %v733
    %736 = vrot.lane.b32.xlu0 %v724, 32
    %v737 = vpop.permute.xlu0 %736
    %739 = vst.msk [vmem:[#allocation4 + $0x3] sm:$0x1] %vm161, %v737
    %740 = vst.msk [vmem:[#allocation4 + $0x4] sm:$0x1] %vm161, %v725
    %742 = vrot.lane.b32.xlu0 %v725, 96
    %v743 = vpop.permute.xlu0 %742
    %745 = vst.msk [vmem:[#allocation4 + $0x5] sm:$0x1] %vm161, %v743
    %746 = vrot.lane.b32.xlu0 %v725, 64
    %v747 = vpop.permute.xlu0 %746
    %749 = vst.msk [vmem:[#allocation4 + $0x6] sm:$0x1] %vm161, %v747
    %750 = vrot.lane.b32.xlu0 %v725, 32
    %v751 = vpop.permute.xlu0 %750
    %753 = vst.msk [vmem:[#allocation4 + $0x7] sm:$0x1] %vm161, %v751
    %v754 = vld [vmem:[#allocation4] sm:$0xff]
    %v755 = vmul.f32 %v664, %v754
    %v756 = vsel %vm94, %v755, 0.0
    %v757 = vrot.slane %v756, 4
    %v758 = vadd.f32 %v756, %v757
    %v759 = vrot.slane %v758, 2
    %v760 = vadd.f32 %v758, %v759
    %v761 = vrot.slane %v760, 1
    %v762 = vadd.f32 %v760, %v761
    %vm763 = vcmp.gt.f32.partialorder %v762, 0.0
    %v764 = vmin.f32 %v762, 0.0
    %v765 = vmul.f32 %v764, 1.442695
    %v766 = vpow.pop %v765
    %v767 = vsub.f32 %v766, 1.0
    %v768 = vsel %vm763, %v762, %v767
    %v769 = vld [vmem:[#allocation10 + $0x120] sm:$0xff]
    %v770 = vld [vmem:[#allocation10 + $0x130] sm:$0xff]
    %v771 = vld [vmem:[#allocation10 + $0x140] sm:$0xff]
    %v772 = vld [vmem:[#allocation10 + $0x150] sm:$0xff]
    %v773 = vld [vmem:[#allocation10 + $0x160] ss:$0 sm:$0xff]
    %774 = vmatpush.msra.mxu0 0.0
    %775 = vmatpush.msra.mxu0 0.0
    %776 = vmatpush.msra.mxu0 0.0
    %777 = vmatpush.msra.mxu0 0.0
    %778 = vmatpush.msra.mxu0 0.0
    %779 = vmatpush.msra.mxu0 0.0
    %780 = vmatpush.msra.mxu0 0.0
    %781 = vmatpush.msra.mxu0 0.0
    %782 = vmatpush.msra.mxu0 0.0
    %783 = vmatpush.msra.mxu0 0.0
    %784 = vmatpush.msra.mxu0 0.0
    %785 = vmatpush.msra.mxu0 0.0
    %786 = vmatpush.msra.mxu0 %v772
    %787 = vmatpush.msra.mxu0 %v771
    %788 = vmatpush.msra.mxu0 %v770
    %789 = vmatpush.msra.mxu0 %v769
    %790 = vmatmul.f32.gmra.mxu0 %v682
    %v791 = vpop.f32.mrf.mxu0
    %v792 = vadd.f32 %v773, %v791
    %793 = vdwg.mxu0
    %v794 = vand.u32 2147483647, %v792
    %v795 = vmul.f32 %v768, %v794
    %v796 = vsel %vm161, %v795, 0.0
    %797 = vadd.xlane.f32.xlu0 %v796
    %v798 = vpop.xlane.xlu0 %797
    %vm799 = vcmp.gt.f32.partialorder %v798, 0.0
    %v800 = vmin.f32 %v798, 0.0
    %v801 = vmul.f32 %v800, 1.442695
    %v802 = vpow.pop %v801
    %v803 = vsub.f32 %v802, 1.0
    %v804 = vsel %vm799, %v798, %v803
    %vm805 = vcmask 0
    %806 = vst.msk [vmem:[#allocation11] sm:$0x1] %vm805, %v804
    // Predicated region
    $region26: #{tpu_custom_call.1} parent=1 // pred_check
      _
    $region27: #{tpu_custom_call.1} parent=1 // pred_check_branch
      %808 = sbr.rel (0) target = $region29
    $region28: #{tpu_custom_call.1} parent=1 // pred_region
      %810 = vsyncadd [#allocation7], 0
      %s812 = sshll.u32 [#allocation11], 4
      %s813 = int_to_ptr.vmem [resolvable:$true] %s812
      %s814 = sshll.u32 %s3, 4
      %s815 = int_to_ptr.hbm [resolvable:$true] %s814
      %817 = dma.vmem_to_hbm [thread:$0]  %s813, 16, %s815, [#allocation7]
    $region29: #{tpu_custom_call.1} parent=1 // pred_fallthru
      _
    // Predicated region
    $region30: #{tpu_custom_call.1} parent=1 // pred_check
      _
    $region31: #{tpu_custom_call.1} parent=1 // pred_check_branch
      %819 = sbr.rel (0) target = $region33
    $region32: #{tpu_custom_call.1} parent=1 // pred_region
      %821 = dma.done [#allocation7], 16
    $region33: #{tpu_custom_call.1} parent=1 // pred_fallthru
      _
    %822 = vsyncpa [#allocation6], 1
    %823 = vsyncpa [#allocation9], 1
    %824 = vsyncpa [#allocation7], 1

</llo_original>
